<compile_context>
chip_gen: v7x
topology: tpu7x:2x2x1
jax: 0.10.0
libtpu: 0.0.40
codegen_flags: <defaults>
</compile_context>

<pallas_src>
import functools

import jax
import jax.numpy as jnp
from jax.experimental import pallas as pl
from jax.experimental.pallas import tpu as pltpu

_LANE = 128
_SUBLANE = 8
_INV_SQRT2 = 0.7071067811865476  # 1/sqrt(2)


def _round_up(x: int, m: int) -> int:
    return (x + m - 1) // m * m


def _gelu_exact_f32(h):
    # exact (erf-based) GELU, matching torch.nn.functional.gelu default
    return 0.5 * h * (1.0 + jax.lax.erf(h * _INV_SQRT2))


# ----------------------------- kernels ------------------------------------- #

def _mlp_double_kernel(x_ref, w1_ref, b1_ref, w2_ref, b2_ref, o_ref, *, mxu_dtype):
    x = x_ref[...]
    w1 = w1_ref[...]
    w2 = w2_ref[...]
    if mxu_dtype is not None:
        x = x.astype(mxu_dtype)
        w1 = w1.astype(mxu_dtype)
        w2 = w2.astype(mxu_dtype)
    # enc: x @ W1 + b1  (f32 accumulation on the MXU)
    h = jnp.dot(x, w1, preferred_element_type=jnp.float32)
    h = h + b1_ref[...].astype(jnp.float32)
    # exact GELU in f32 (torch default)
    h = _gelu_exact_f32(h)
    if mxu_dtype is not None:
        h = h.astype(mxu_dtype)
    # dec: h @ W2 + b2
    out = jnp.dot(h, w2, preferred_element_type=jnp.float32)
    out = out + b2_ref[...].astype(jnp.float32)
    o_ref[...] = out.astype(o_ref.dtype)


def _linear_kernel(x_ref, w_ref, b_ref, o_ref, *, mxu_dtype):
    x = x_ref[...]
    w = w_ref[...]
    if mxu_dtype is not None:
        x = x.astype(mxu_dtype)
        w = w.astype(mxu_dtype)
    out = jnp.dot(x, w, preferred_element_type=jnp.float32)
    out = out + b_ref[...].astype(jnp.float32)
    o_ref[...] = out.astype(o_ref.dtype)


# ----------------------------- wrapper ------------------------------------- #

def _pick_tile_n(n_pad, in_p, mid_p, out_p, x_itemsize, w_itemsize, out_itemsize,
                 requested, vmem_budget_bytes=24 * 1024 * 1024):
    """Largest row tile that keeps resident weights + double-buffered tiles +
    f32 intermediates inside a conservative VMEM budget (v7x-safe)."""
    weight_bytes = (in_p * mid_p + mid_p * out_p + mid_p + out_p) * w_itemsize
    per_row = (2 * in_p * x_itemsize            # x tile, double-buffered
               + 2 * out_p * out_itemsize       # out tile, double-buffered
               + mid_p * 4                      # f32 h intermediate
               + out_p * 4)                     # f32 out accumulator
    avail = max(vmem_budget_bytes - weight_bytes, per_row * _SUBLANE)
    max_rows = max(_SUBLANE, (avail // per_row) // _SUBLANE * _SUBLANE)
    tile = min(requested, max_rows, n_pad)
    tile = max(_SUBLANE, tile // _SUBLANE * _SUBLANE)
    return tile


def mlp_forward(x, params, *, tile_n=512, mxu_dtype=None):
    """Pallas MLP forward.

    params:
      double path: dict with 'w1' [in,mid], 'b1' [1,mid], 'w2' [mid,out], 'b2' [1,out]
      single path: dict with 'w'  [in,out], 'b'  [1,out]
    x: [N, in_dims]
    mxu_dtype: None (use stored f32) or jnp.bfloat16 to feed bf16 to the MXU
               (f32 accumulation, GELU in f32).
    """
    n, in_dims = x.shape
    double = "w1" in params

    # --- lane-dense padding of feature dims (multiples of 128) -------------- #
    in_p = _round_up(in_dims, _LANE)
    if double:
        w1, b1, w2, b2 = params["w1"], params["b1"], params["w2"], params["b2"]
        mid_dims, out_dims = w1.shape[1], w2.shape[1]
        mid_p = _round_up(mid_dims, _LANE)
        out_p = _round_up(out_dims, _LANE)
        w1_p = jnp.zeros((in_p, mid_p), w1.dtype).at[:in_dims, :mid_dims].set(w1)
        b1_p = jnp.zeros((1, mid_p), b1.dtype).at[:, :mid_dims].set(b1)
        w2_p = jnp.zeros((mid_p, out_p), w2.dtype).at[:mid_dims, :out_dims].set(w2)
        b2_p = jnp.zeros((1, out_p), b2.dtype).at[:, :out_dims].set(b2)
        w_itemsize = w1.dtype.itemsize
    else:
        w, b = params["w"], params["b"]
        out_dims = w.shape[1]
        mid_p = 0
        out_p = _round_up(out_dims, _LANE)
        w_p = jnp.zeros((in_p, out_p), w.dtype).at[:in_dims, :out_dims].set(w)
        b_p = jnp.zeros((1, out_p), b.dtype).at[:, :out_dims].set(b)
        w_itemsize = w.dtype.itemsize

    # --- row tiling: TILE_N sized for a conservative (v7x-safe) VMEM budget - #
    n8 = _round_up(n, _SUBLANE)
    eff_itemsize = (jnp.dtype(mxu_dtype).itemsize
                    if mxu_dtype is not None else x.dtype.itemsize)
    tn = _pick_tile_n(n8, in_p, mid_p, out_p,
                      x_itemsize=eff_itemsize, w_itemsize=w_itemsize,
                      out_itemsize=x.dtype.itemsize, requested=tile_n)
    n_pad = _round_up(n, tn)
    grid = (n_pad // tn,)

    x_p = jnp.zeros((n_pad, in_p), x.dtype).at[:n, :in_dims].set(x)

    row_spec = lambda d: pl.BlockSpec((tn, d), lambda i: (i, 0))
    resident = lambda shape: pl.BlockSpec(shape, lambda i: (0, 0))

    cparams = pltpu.CompilerParams(dimension_semantics=("parallel",))

    if double:
        flops = 2 * n_pad * (in_p * mid_p + mid_p * out_p)
        cost = pl.CostEstimate(
            flops=flops,
            transcendentals=n_pad * mid_p,
            bytes_accessed=(x_p.size * x_p.dtype.itemsize
                            + (in_p * mid_p + mid_p * out_p) * w_itemsize
                            + n_pad * out_p * x.dtype.itemsize),
        )
        out_p_arr = pl.pallas_call(
            functools.partial(_mlp_double_kernel, mxu_dtype=mxu_dtype),
            out_shape=jax.ShapeDtypeStruct((n_pad, out_p), x.dtype),
            grid=grid,
            in_specs=[
                row_spec(in_p),
                resident(w1_p.shape),
                resident(b1_p.shape),
                resident(w2_p.shape),
                resident(b2_p.shape),
            ],
            out_specs=row_spec(out_p),
            compiler_params=cparams,
            cost_estimate=cost,
        )(x_p, w1_p, b1_p, w2_p, b2_p)
    else:
        flops = 2 * n_pad * in_p * out_p
        cost = pl.CostEstimate(
            flops=flops,
            transcendentals=0,
            bytes_accessed=(x_p.size * x_p.dtype.itemsize
                            + in_p * out_p * w_itemsize
                            + n_pad * out_p * x.dtype.itemsize),
        )
        out_p_arr = pl.pallas_call(
            functools.partial(_linear_kernel, mxu_dtype=mxu_dtype),
            out_shape=jax.ShapeDtypeStruct((n_pad, out_p), x.dtype),
            grid=grid,
            in_specs=[row_spec(in_p), resident(w_p.shape), resident(b_p.shape)],
            out_specs=row_spec(out_p),
            compiler_params=cparams,
            cost_estimate=cost,
        )(x_p, w_p, b_p)

    return out_p_arr[:n, :out_dims]


# ----------------------------- init & reference ----------------------------- #

def init_mlp_params(key, in_dims, out_dims, mid_dims=None, dtype=jnp.float32):
    """Deterministic init mirroring nn.Linear shapes (stored pre-transposed)."""
    if mid_dims is not None:
        k1, k2, k3, k4 = jax.random.split(key, 4)
        s1 = 1.0 / jnp.sqrt(in_dims)
        s2 = 1.0 / jnp.sqrt(mid_dims)
        return {
            "w1": jax.random.uniform(k1, (in_dims, mid_dims), dtype, -s1, s1),
            "b1": jax.random.uniform(k2, (1, mid_dims), dtype, -s1, s1),
            "w2": jax.random.uniform(k3, (mid_dims, out_dims), dtype, -s2, s2),
            "b2": jax.random.uniform(k4, (1, out_dims), dtype, -s2, s2),
        }
    else:
        k1, k2 = jax.random.split(key, 2)
        s = 1.0 / jnp.sqrt(in_dims)
        return {
            "w": jax.random.uniform(k1, (in_dims, out_dims), dtype, -s, s),
            "b": jax.random.uniform(k2, (1, out_dims), dtype, -s, s),
        }


def _reference(x, params):
    if "w1" in params:
        h = x @ params["w1"] + params["b1"]
        h = jax.nn.gelu(h, approximate=False)
        return h @ params["w2"] + params["b2"]
    return x @ params["w"] + params["b"]


# ----------------------------- test ----------------------------------------- #

if __name__ == "__main__":
    key = jax.random.PRNGKey(0)
    kx, kx2, kp1, kp2 = jax.random.split(key, 4)

    # small shapes: N tokens, in_dims=16, mid_dims=32, out_dims=8
    N, IN, MID, OUT = 8, 16, 32, 8
    x = jax.random.normal(kx, (N, IN), jnp.float32)

    # double path (enc -> GELU -> dec), full f32 (exact parity with torch)
    params_d = init_mlp_params(kp1, IN, OUT, mid_dims=MID)
    y_d = jax.block_until_ready(mlp_forward(x, params_d))
    ref_d = _reference(x, params_d)
    assert jnp.allclose(y_d, ref_d, atol=1e-4, rtol=1e-4), "double-path mismatch"

    # single-linear path (mid_dims=None)
    params_s = init_mlp_params(kp2, IN, OUT, mid_dims=None)
    y_s = jax.block_until_ready(mlp_forward(x, params_s))
    ref_s = _reference(x, params_s)
    assert jnp.allclose(y_s, ref_s, atol=1e-4, rtol=1e-4), "single-path mismatch"

    # multi-tile grid + row padding path (N not a multiple of the tile)
    N2 = 300
    x2 = jax.random.normal(kx2, (N2, IN), jnp.float32)
    y2 = jax.block_until_ready(mlp_forward(x2, params_d, tile_n=128))
    ref2 = _reference(x2, params_d)
    assert jnp.allclose(y2, ref2, atol=1e-4, rtol=1e-4), "multi-tile mismatch"

    # optional bf16-at-MXU path (f32 accumulation) -> looser tolerance
    y_bf = jax.block_until_ready(mlp_forward(x2, params_d, tile_n=128,
                                             mxu_dtype=jnp.bfloat16))
    assert jnp.allclose(y_bf, ref2, atol=3e-2, rtol=3e-2), "bf16-path mismatch"

    print("KERNEL_OK")
</pallas_src>

<mosaic_0001>
module attributes {stable_mosaic.version = 11 : i64} {
  func.func @_mlp_double_kernel(%arg0: i32, %arg1: memref<8x128xf32, #tpu.memory_space<vmem>>, %arg2: memref<128x128xf32, #tpu.memory_space<vmem>>, %arg3: memref<1x128xf32, #tpu.memory_space<vmem>>, %arg4: memref<128x128xf32, #tpu.memory_space<vmem>>, %arg5: memref<1x128xf32, #tpu.memory_space<vmem>>, %arg6: memref<8x128xf32, #tpu.memory_space<vmem>>) attributes {dimension_semantics = [#tpu.dimension_semantics<parallel>], iteration_bounds = array<i64: 1>, scalar_prefetch = 0 : i64, scratch_operands = 0 : i64, tpu.core_type = #tpu.core_type<tc>, window_params = [{transform_indices = @transform_0, window_bounds = array<i64: 8, 128>}, {pipeline_mode = #tpu.pipeline_mode<synchronous>, transform_indices = @transform_1, window_bounds = array<i64: 128, 128>}, {pipeline_mode = #tpu.pipeline_mode<synchronous>, transform_indices = @transform_2, window_bounds = array<i64: 1, 128>}, {pipeline_mode = #tpu.pipeline_mode<synchronous>, transform_indices = @transform_3, window_bounds = array<i64: 128, 128>}, {pipeline_mode = #tpu.pipeline_mode<synchronous>, transform_indices = @transform_4, window_bounds = array<i64: 1, 128>}, {transform_indices = @transform_5, window_bounds = array<i64: 8, 128>}]} {
    %c0 = arith.constant 0 : index
    %c0_0 = arith.constant 0 : index
    %0 = vector.load %arg1[%c0, %c0_0] : memref<8x128xf32, #tpu.memory_space<vmem>>, vector<8x128xf32>
    %c0_1 = arith.constant 0 : index
    %c0_2 = arith.constant 0 : index
    %1 = vector.load %arg2[%c0_1, %c0_2] : memref<128x128xf32, #tpu.memory_space<vmem>>, vector<128x128xf32>
    %c0_3 = arith.constant 0 : index
    %c0_4 = arith.constant 0 : index
    %2 = vector.load %arg4[%c0_3, %c0_4] : memref<128x128xf32, #tpu.memory_space<vmem>>, vector<128x128xf32>
    %cst = arith.constant dense<0.000000e+00> : vector<8x128xf32>
    %3 = tpu.matmul %0, %1, %cst {dimension_numbers = #tpu.dot_dimension_numbers<[1], [0], [0], [1], [0, 0, 1, 1], [], []>} : vector<8x128xf32>, vector<128x128xf32>, vector<8x128xf32> -> vector<8x128xf32>
    %c0_5 = arith.constant 0 : index
    %c0_6 = arith.constant 0 : index
    %4 = vector.load %arg3[%c0_5, %c0_6] : memref<1x128xf32, #tpu.memory_space<vmem>>, vector<1x128xf32>
    %5 = vector.broadcast %4 : vector<1x128xf32> to vector<8x128xf32>
    %6 = arith.addf %3, %5 : vector<8x128xf32>
    %cst_7 = arith.constant 5.000000e-01 : f32
    %7 = vector.broadcast %cst_7 : f32 to vector<8x128xf32>
    %8 = arith.mulf %7, %6 : vector<8x128xf32>
    %cst_8 = arith.constant 0.707106769 : f32
    %9 = vector.broadcast %cst_8 : f32 to vector<8x128xf32>
    %10 = arith.mulf %6, %9 : vector<8x128xf32>
    %11 = math.erf %10 : vector<8x128xf32>
    %cst_9 = arith.constant 1.000000e+00 : f32
    %12 = vector.broadcast %cst_9 : f32 to vector<8x128xf32>
    %13 = arith.addf %12, %11 : vector<8x128xf32>
    %14 = arith.mulf %8, %13 : vector<8x128xf32>
    %cst_10 = arith.constant dense<0.000000e+00> : vector<8x128xf32>
    %15 = tpu.matmul %14, %2, %cst_10 {dimension_numbers = #tpu.dot_dimension_numbers<[1], [0], [0], [1], [0, 0, 1, 1], [], []>} : vector<8x128xf32>, vector<128x128xf32>, vector<8x128xf32> -> vector<8x128xf32>
    %c0_11 = arith.constant 0 : index
    %c0_12 = arith.constant 0 : index
    %16 = vector.load %arg5[%c0_11, %c0_12] : memref<1x128xf32, #tpu.memory_space<vmem>>, vector<1x128xf32>
    %17 = vector.broadcast %16 : vector<1x128xf32> to vector<8x128xf32>
    %18 = arith.addf %15, %17 : vector<8x128xf32>
    %c0_13 = arith.constant 0 : index
    %c0_14 = arith.constant 0 : index
    %19 = vector.load %arg6[%c0_13, %c0_14] : memref<8x128xf32, #tpu.memory_space<vmem>>, vector<8x128xf32>
    tpu.vector_store %arg6[%c0_13, %c0_14], %18 {strides = array<i32>} : memref<8x128xf32, #tpu.memory_space<vmem>>, vector<8x128xf32>,
    return
  }
  func.func @transform_0(%arg0: i32) -> (i32, i32) {
    %c0_i32 = arith.constant 0 : i32
    %c0_i32_0 = arith.constant 0 : i32
    return %arg0, %c0_i32 : i32, i32
  }
  func.func @transform_1(%arg0: i32) -> (i32, i32) {
    %c0_i32 = arith.constant 0 : i32
    %c0_i32_0 = arith.constant 0 : i32
    %c0_i32_1 = arith.constant 0 : i32
    return %c0_i32, %c0_i32_0 : i32, i32
  }
  func.func @transform_2(%arg0: i32) -> (i32, i32) {
    %c0_i32 = arith.constant 0 : i32
    %c0_i32_0 = arith.constant 0 : i32
    %c0_i32_1 = arith.constant 0 : i32
    return %c0_i32, %c0_i32_0 : i32, i32
  }
  func.func @transform_3(%arg0: i32) -> (i32, i32) {
    %c0_i32 = arith.constant 0 : i32
    %c0_i32_0 = arith.constant 0 : i32
    %c0_i32_1 = arith.constant 0 : i32
    return %c0_i32, %c0_i32_0 : i32, i32
  }
  func.func @transform_4(%arg0: i32) -> (i32, i32) {
    %c0_i32 = arith.constant 0 : i32
    %c0_i32_0 = arith.constant 0 : i32
    %c0_i32_1 = arith.constant 0 : i32
    return %c0_i32, %c0_i32_0 : i32, i32
  }
  func.func @transform_5(%arg0: i32) -> (i32, i32) {
    %c0_i32 = arith.constant 0 : i32
    %c0_i32_0 = arith.constant 0 : i32
    return %arg0, %c0_i32 : i32, i32
  }
}

</mosaic_0001>

<llo_original>
// kernel: tpu_custom_call.1
$region0: #{tpu_custom_call.1}
  #allocation0 [shape = 'u32[]', space=smem, size = 0x4, offset = 0x4, fixed_abs, tag = 'smem constant byte address 0x4 - core index']
  #allocation1 [shape = 'u32[144,128]{1,0:T(1,128)}', space=vmem, size = 0x12000, scoped, tag = 'internal scratch']
  %s0 = inlined_call_operand.hbm [shape: f32[8,128], index: 0, kind: input, shape index: {}]
  %s1 = inlined_call_operand.hbm [shape: f32[128,128], index: 1, kind: input, shape index: {}]
  %s2 = inlined_call_operand.vmem [shape: f32[1,128], index: 2, kind: input, shape index: {}]
  %s3 = inlined_call_operand.hbm [shape: f32[128,128], index: 3, kind: input, shape index: {}]
  %s4 = inlined_call_operand.vmem [shape: f32[1,128], index: 4, kind: input, shape index: {}]
  %s5 = inlined_call_operand.hbm [shape: f32[8,128], index: 5, kind: output, shape index: {}]
  %s6 = sld [smem:[#allocation0]]
  $region42: #{tpu_custom_call.1} parent=0
    _
  %s8 = ssub.s32 1, %s6
  %s9 = scalar_select 0, %s8, %s6
  $region1: #{tpu_custom_call.1} parent=0
    #allocation2 [shape = 'u8[4096]{0}', space=vmem, size = 0x1000, scoped, tag = 'input window, operand 0, single buffered']
    #allocation3 [shape = 's32[1]{0}', space=sflag, size = 0x4, scoped, tag = 'scoped memory for tpu_custom_call.1']
    #allocation4 [shape = 's32[1]{0}', space=sflag, size = 0x4, scoped, tag = 'scoped memory for tpu_custom_call.1']
    #allocation5 [shape = 'u8[65536]{0}', space=vmem, size = 0x10000, scoped, tag = 'input window, operand 1, single buffered']
    #allocation6 [shape = 's32[1]{0}', space=sflag, size = 0x4, scoped, tag = 'scoped memory for tpu_custom_call.1']
    #allocation7 [shape = 'u8[65536]{0}', space=vmem, size = 0x10000, scoped, tag = 'input window, operand 3, single buffered']
    #allocation8 [shape = 'u8[4096]{0}', space=vmem, size = 0x1000, scoped, tag = 'output window, operand 0, single buffered']
    %10 = vsyncpa [#allocation3], 0
    %11 = vsyncpa [#allocation6], 0
    %12 = vsyncpa [#allocation4], 0
    // Predicated region
    $region2: #{tpu_custom_call.1} parent=1 // pred_check
      _
    $region3: #{tpu_custom_call.1} parent=1 // pred_check_branch
      %14 = sbr.rel (0) target = $region5
    $region4: #{tpu_custom_call.1} parent=1 // pred_region
      %s16 = ssub.s32 128, 128
      %17 = vsyncadd [#allocation3], %s16
      %s19 = sshll.u32 [#allocation2], 4
      %s20 = int_to_ptr.vmem [resolvable:$true] %s19
      %22 = dma.hbm_to_vmem [thread:$0]  %s0, 128, %s20, [#allocation3]
    $region5: #{tpu_custom_call.1} parent=1 // pred_fallthru
      _
    // Predicated region
    $region6: #{tpu_custom_call.1} parent=1 // pred_check
      _
    $region7: #{tpu_custom_call.1} parent=1 // pred_check_branch
      %24 = sbr.rel (0) target = $region9
    $region8: #{tpu_custom_call.1} parent=1 // pred_region
      %s26 = ssub.s32 2048, 2048
      %27 = vsyncadd [#allocation6], %s26
      %s28 = sshll.u32 [#allocation5], 4
      %s29 = int_to_ptr.vmem [resolvable:$true] %s28
      %34 = dma.hbm_to_vmem [thread:$0]  %s1, 2048, %s29, [#allocation6], 128, 128, 8
    $region9: #{tpu_custom_call.1} parent=1 // pred_fallthru
      _
    // Predicated region
    $region10: #{tpu_custom_call.1} parent=1 // pred_check
      _
    $region11: #{tpu_custom_call.1} parent=1 // pred_check_branch
      %36 = sbr.rel (0) target = $region13
    $region12: #{tpu_custom_call.1} parent=1 // pred_region
      _
    $region13: #{tpu_custom_call.1} parent=1 // pred_fallthru
      _
    // Predicated region
    $region14: #{tpu_custom_call.1} parent=1 // pred_check
      _
    $region15: #{tpu_custom_call.1} parent=1 // pred_check_branch
      %38 = sbr.rel (0) target = $region17
    $region16: #{tpu_custom_call.1} parent=1 // pred_region
      %s40 = ssub.s32 2048, 2048
      %41 = vsyncadd [#allocation6], %s40
      %s42 = sshll.u32 [#allocation7], 4
      %s43 = int_to_ptr.vmem [resolvable:$true] %s42
      %48 = dma.hbm_to_vmem [thread:$0]  %s3, 2048, %s43, [#allocation6], 128, 128, 8
    $region17: #{tpu_custom_call.1} parent=1 // pred_fallthru
      _
    // Predicated region
    $region18: #{tpu_custom_call.1} parent=1 // pred_check
      _
    $region19: #{tpu_custom_call.1} parent=1 // pred_check_branch
      %50 = sbr.rel (0) target = $region21
    $region20: #{tpu_custom_call.1} parent=1 // pred_region
      _
    $region21: #{tpu_custom_call.1} parent=1 // pred_fallthru
      _
    // Predicated region
    $region22: #{tpu_custom_call.1} parent=1 // pred_check
      _
    $region23: #{tpu_custom_call.1} parent=1 // pred_check_branch
      %52 = sbr.rel (0) target = $region25
    $region24: #{tpu_custom_call.1} parent=1 // pred_region
      %53 = dma.done [#allocation3], 128
    $region25: #{tpu_custom_call.1} parent=1 // pred_fallthru
      _
    // Predicated region
    $region26: #{tpu_custom_call.1} parent=1 // pred_check
      _
    $region27: #{tpu_custom_call.1} parent=1 // pred_check_branch
      %55 = sbr.rel (0) target = $region29
    $region28: #{tpu_custom_call.1} parent=1 // pred_region
      %56 = dma.done [#allocation6], 2048
    $region29: #{tpu_custom_call.1} parent=1 // pred_fallthru
      _
    // Predicated region
    $region30: #{tpu_custom_call.1} parent=1 // pred_check
      _
    $region31: #{tpu_custom_call.1} parent=1 // pred_check_branch
      %58 = sbr.rel (0) target = $region33
    $region32: #{tpu_custom_call.1} parent=1 // pred_region
      %59 = dma.done [#allocation6], 2048
    $region33: #{tpu_custom_call.1} parent=1 // pred_fallthru
      _
    %v60 = vld [vmem:[#allocation2] sm:$0xff]
    %v61 = vld [vmem:[#allocation5] sm:$0xff]
    %v62 = vld [vmem:[#allocation5 + $0x8] sm:$0xff]
    %v63 = vld [vmem:[#allocation5 + $0x10] sm:$0xff]
    %v64 = vld [vmem:[#allocation5 + $0x18] sm:$0xff]
    %v65 = vld [vmem:[#allocation5 + $0x20] sm:$0xff]
    %v66 = vld [vmem:[#allocation5 + $0x28] sm:$0xff]
    %v67 = vld [vmem:[#allocation5 + $0x30] sm:$0xff]
    %v68 = vld [vmem:[#allocation5 + $0x38] sm:$0xff]
    %v69 = vld [vmem:[#allocation5 + $0x40] sm:$0xff]
    %v70 = vld [vmem:[#allocation5 + $0x48] sm:$0xff]
    %v71 = vld [vmem:[#allocation5 + $0x50] sm:$0xff]
    %v72 = vld [vmem:[#allocation5 + $0x58] sm:$0xff]
    %v73 = vld [vmem:[#allocation5 + $0x60] sm:$0xff]
    %v74 = vld [vmem:[#allocation5 + $0x68] sm:$0xff]
    %v75 = vld [vmem:[#allocation5 + $0x70] sm:$0xff]
    %v76 = vld [vmem:[#allocation5 + $0x78] sm:$0xff]
    %v77 = vld [vmem:[#allocation7] sm:$0xff]
    %v78 = vld [vmem:[#allocation7 + $0x8] sm:$0xff]
    %v79 = vld [vmem:[#allocation7 + $0x10] sm:$0xff]
    %v80 = vld [vmem:[#allocation7 + $0x18] sm:$0xff]
    %v81 = vld [vmem:[#allocation7 + $0x20] sm:$0xff]
    %v82 = vld [vmem:[#allocation7 + $0x28] sm:$0xff]
    %v83 = vld [vmem:[#allocation7 + $0x30] sm:$0xff]
    %v84 = vld [vmem:[#allocation7 + $0x38] sm:$0xff]
    %v85 = vld [vmem:[#allocation7 + $0x40] sm:$0xff]
    %v86 = vld [vmem:[#allocation7 + $0x48] sm:$0xff]
    %v87 = vld [vmem:[#allocation7 + $0x50] sm:$0xff]
    %v88 = vld [vmem:[#allocation7 + $0x58] sm:$0xff]
    %v89 = vld [vmem:[#allocation7 + $0x60] sm:$0xff]
    %v90 = vld [vmem:[#allocation7 + $0x68] sm:$0xff]
    %v91 = vld [vmem:[#allocation7 + $0x70] sm:$0xff]
    %v92 = vld [vmem:[#allocation7 + $0x78] sm:$0xff]
    %v93 = vld [vmem:[%s2] sm:$0x1]
    %v95 = vlaneseq
    %v96 = vshrl.u32 %v95, 7
    %v97 = vsub.s32 0, %v96
    %v98 = vrot.slane %v93, %v97
    %100 = vmatprep.subr.mxu0 0.0
    %101 = vmatpush1.msra.mxu0 %v61
    %102 = vmatprep.subr.mxu0 0.0
    %103 = vmatpush1.msra.mxu0 %v62
    %104 = vmatprep.subr.mxu0 0.0
    %105 = vmatpush1.msra.mxu0 %v63
    %106 = vmatprep.subr.mxu0 0.0
    %107 = vmatpush1.msra.mxu0 %v64
    %108 = vmatprep.subr.mxu0 0.0
    %109 = vmatpush1.msra.mxu0 %v65
    %110 = vmatprep.subr.mxu0 0.0
    %111 = vmatpush1.msra.mxu0 %v66
    %112 = vmatprep.subr.mxu0 0.0
    %113 = vmatpush1.msra.mxu0 %v67
    %114 = vmatprep.subr.mxu0 0.0
    %115 = vmatpush1.msra.mxu0 %v68
    %116 = vmatprep.subr.mxu0 0.0
    %117 = vmatpush1.msra.mxu0 %v69
    %118 = vmatprep.subr.mxu0 0.0
    %119 = vmatpush1.msra.mxu0 %v70
    %120 = vmatprep.subr.mxu0 0.0
    %121 = vmatpush1.msra.mxu0 %v71
    %122 = vmatprep.subr.mxu0 0.0
    %123 = vmatpush1.msra.mxu0 %v72
    %124 = vmatprep.subr.mxu0 0.0
    %125 = vmatpush1.msra.mxu0 %v73
    %126 = vmatprep.subr.mxu0 0.0
    %127 = vmatpush1.msra.mxu0 %v74
    %128 = vmatprep.subr.mxu0 0.0
    %129 = vmatpush1.msra.mxu0 %v75
    %130 = vmatprep.subr.mxu0 0.0
    %131 = vmatpush1.msra.mxu0 %v76
    %132 = vmatprep.subr.mxu0 0.0
    %133 = vmatpush1.msra.mxu0 0.0
    %134 = vmatprep.subr.mxu0 0.0
    %135 = vmatpush1.msra.mxu0 0.0
    %136 = vmatprep.subr.mxu0 0.0
    %137 = vmatpush1.msra.mxu0 0.0
    %138 = vmatprep.subr.mxu0 0.0
    %139 = vmatpush1.msra.mxu0 0.0
    %140 = vmatprep.subr.mxu0 0.0
    %141 = vmatpush1.msra.mxu0 0.0
    %142 = vmatprep.subr.mxu0 0.0
    %143 = vmatpush1.msra.mxu0 0.0
    %144 = vmatprep.subr.mxu0 0.0
    %145 = vmatpush1.msra.mxu0 0.0
    %146 = vmatprep.subr.mxu0 0.0
    %147 = vmatpush1.msra.mxu0 0.0
    %148 = vmatprep.subr.mxu0 0.0
    %149 = vmatpush1.msra.mxu0 0.0
    %150 = vmatprep.subr.mxu0 0.0
    %151 = vmatpush1.msra.mxu0 0.0
    %152 = vmatprep.subr.mxu0 0.0
    %153 = vmatpush1.msra.mxu0 0.0
    %154 = vmatprep.subr.mxu0 0.0
    %155 = vmatpush1.msra.mxu0 0.0
    %156 = vmatprep.subr.mxu0 0.0
    %157 = vmatpush1.msra.mxu0 0.0
    %158 = vmatprep.subr.mxu0 0.0
    %159 = vmatpush1.msra.mxu0 0.0
    %160 = vmatprep.subr.mxu0 0.0
    %161 = vmatpush1.msra.mxu0 0.0
    %162 = vmatprep.subr.mxu0 0.0
    %163 = vmatpush1.msra.mxu0 0.0
    %164 = vmatprep.mubr.f32.mxu0 0.0
    %165 = vmatmul.mubr.f32.gmra.mrb[0].mxu0 %v60
    %v166 = vpop.f32.mrb[0].mxu0
    %v167 = vadd.f32 %v98, %v166
    %v168 = vpop.f32.mrb[0].mxu0
    %169 = vdwg.mxu0
    %v170 = vmul.f32 %v167, 0.5
    %v171 = vmul.f32 %v167, 0.70710677
    %v172 = verf.f32.pop %v171
    %v173 = vadd.f32 %v172, 1.0
    %v174 = vmul.f32 %v170, %v173
    %v175 = vld [vmem:[%s4] sm:$0x1]
    %v177 = vlaneseq
    %v178 = vshrl.u32 %v177, 7
    %v179 = vsub.s32 0, %v178
    %v180 = vrot.slane %v175, %v179
    %182 = vmatprep.subr.mxu0 0.0
    %183 = vmatpush1.msra.mxu0 %v77
    %184 = vmatprep.subr.mxu0 0.0
    %185 = vmatpush1.msra.mxu0 %v78
    %186 = vmatprep.subr.mxu0 0.0
    %187 = vmatpush1.msra.mxu0 %v79
    %188 = vmatprep.subr.mxu0 0.0
    %189 = vmatpush1.msra.mxu0 %v80
    %190 = vmatprep.subr.mxu0 0.0
    %191 = vmatpush1.msra.mxu0 %v81
    %192 = vmatprep.subr.mxu0 0.0
    %193 = vmatpush1.msra.mxu0 %v82
    %194 = vmatprep.subr.mxu0 0.0
    %195 = vmatpush1.msra.mxu0 %v83
    %196 = vmatprep.subr.mxu0 0.0
    %197 = vmatpush1.msra.mxu0 %v84
    %198 = vmatprep.subr.mxu0 0.0
    %199 = vmatpush1.msra.mxu0 %v85
    %200 = vmatprep.subr.mxu0 0.0
    %201 = vmatpush1.msra.mxu0 %v86
    %202 = vmatprep.subr.mxu0 0.0
    %203 = vmatpush1.msra.mxu0 %v87
    %204 = vmatprep.subr.mxu0 0.0
    %205 = vmatpush1.msra.mxu0 %v88
    %206 = vmatprep.subr.mxu0 0.0
    %207 = vmatpush1.msra.mxu0 %v89
    %208 = vmatprep.subr.mxu0 0.0
    %209 = vmatpush1.msra.mxu0 %v90
    %210 = vmatprep.subr.mxu0 0.0
    %211 = vmatpush1.msra.mxu0 %v91
    %212 = vmatprep.subr.mxu0 0.0
    %213 = vmatpush1.msra.mxu0 %v92
    %214 = vmatprep.subr.mxu0 0.0
    %215 = vmatpush1.msra.mxu0 0.0
    %216 = vmatprep.subr.mxu0 0.0
    %217 = vmatpush1.msra.mxu0 0.0
    %218 = vmatprep.subr.mxu0 0.0
    %219 = vmatpush1.msra.mxu0 0.0
    %220 = vmatprep.subr.mxu0 0.0
    %221 = vmatpush1.msra.mxu0 0.0
    %222 = vmatprep.subr.mxu0 0.0
    %223 = vmatpush1.msra.mxu0 0.0
    %224 = vmatprep.subr.mxu0 0.0
    %225 = vmatpush1.msra.mxu0 0.0
    %226 = vmatprep.subr.mxu0 0.0
    %227 = vmatpush1.msra.mxu0 0.0
    %228 = vmatprep.subr.mxu0 0.0
    %229 = vmatpush1.msra.mxu0 0.0
    %230 = vmatprep.subr.mxu0 0.0
    %231 = vmatpush1.msra.mxu0 0.0
    %232 = vmatprep.subr.mxu0 0.0
    %233 = vmatpush1.msra.mxu0 0.0
    %234 = vmatprep.subr.mxu0 0.0
    %235 = vmatpush1.msra.mxu0 0.0
    %236 = vmatprep.subr.mxu0 0.0
    %237 = vmatpush1.msra.mxu0 0.0
    %238 = vmatprep.subr.mxu0 0.0
    %239 = vmatpush1.msra.mxu0 0.0
    %240 = vmatprep.subr.mxu0 0.0
    %241 = vmatpush1.msra.mxu0 0.0
    %242 = vmatprep.subr.mxu0 0.0
    %243 = vmatpush1.msra.mxu0 0.0
    %244 = vmatprep.subr.mxu0 0.0
    %245 = vmatpush1.msra.mxu0 0.0
    %246 = vmatprep.mubr.f32.mxu0 0.0
    %247 = vmatmul.mubr.f32.gmra.mrb[0].mxu0 %v174
    %v248 = vpop.f32.mrb[0].mxu0
    %v249 = vadd.f32 %v180, %v248
    %v250 = vpop.f32.mrb[0].mxu0
    %251 = vdwg.mxu0
    %252 = vst [vmem:[#allocation8] sm:$0xff] %v249
    // Predicated region
    $region34: #{tpu_custom_call.1} parent=1 // pred_check
      _
    $region35: #{tpu_custom_call.1} parent=1 // pred_check_branch
      %254 = sbr.rel (0) target = $region37
    $region36: #{tpu_custom_call.1} parent=1 // pred_region
      %s256 = ssub.s32 128, 128
      %257 = vsyncadd [#allocation4], %s256
      %s259 = sshll.u32 [#allocation8], 4
      %s260 = int_to_ptr.vmem [resolvable:$true] %s259
      %262 = dma.vmem_to_hbm [thread:$0]  %s260, 128, %s5, [#allocation4]
    $region37: #{tpu_custom_call.1} parent=1 // pred_fallthru
      _
    // Predicated region
    $region38: #{tpu_custom_call.1} parent=1 // pred_check
      _
    $region39: #{tpu_custom_call.1} parent=1 // pred_check_branch
      %264 = sbr.rel (0) target = $region41
    $region40: #{tpu_custom_call.1} parent=1 // pred_region
      %265 = dma.done [#allocation4], 128
    $region41: #{tpu_custom_call.1} parent=1 // pred_fallthru
      _
    %266 = vsyncpa [#allocation3], 1
    %267 = vsyncpa [#allocation6], 1
    %268 = vsyncpa [#allocation4], 1

</llo_original>
